<compile_context>
chip_gen: v6e
topology: v6e:2x2x1
jax: 0.10.0
libtpu: 0.0.40
codegen_flags: <defaults>
</compile_context>

<pallas_src>
import functools

import jax
import jax.numpy as jnp
from jax.experimental import pallas as pl
from jax.experimental.pallas import tpu as pltpu

BN_EPS = 1e-5


def prediction_mlp_kernel(x_ref, w1_ref, gamma_ref, beta_ref, w2_ref, b2_ref,
                          o_ref, h_ref, stat_ref, *, tile_b, batch):
    phase = pl.program_id(0)
    bi = pl.program_id(1)
    row = pl.multiple_of(bi * tile_b, tile_b)

    @pl.when(phase == 0)
    def _():
        @pl.when(bi == 0)
        def _():
            stat_ref[...] = jnp.zeros_like(stat_ref)

        # l1: Linear(in_dim, mid_dim) on the MXU (bf16 in, f32 accumulate).
        # Bias b1 is intentionally omitted: it cancels under training-mode BN.
        h = jnp.dot(x_ref[...], w1_ref[...], preferred_element_type=jnp.float32)
        h_ref[pl.ds(row, tile_b), :] = h
        # Single-pass batch statistics (sum and sum of squares).
        stat_ref[0:1, :] += jnp.sum(h, axis=0, keepdims=True)
        stat_ref[1:2, :] += jnp.sum(h * h, axis=0, keepdims=True)

    @pl.when(phase == 1)
    def _():
        inv_n = jnp.float32(1.0 / batch)
        mean = stat_ref[0:1, :] * inv_n
        var = jnp.maximum(stat_ref[1:2, :] * inv_n - mean * mean, 0.0)
        # Fold BN affine into one scale/shift: h_bn = h * s + t.
        s = gamma_ref[...] * jax.lax.rsqrt(var + BN_EPS)
        t = beta_ref[...] - mean * s
        h = h_ref[pl.ds(row, tile_b), :]
        h = jnp.maximum(h * s + t, 0.0)          # BN + ReLU in one VPU pass
        # l2: Linear(mid_dim, out_dim); feed the MXU bf16, accumulate in f32.
        y = jnp.dot(h.astype(w2_ref.dtype), w2_ref[...],
                    preferred_element_type=jnp.float32)
        o_ref[...] = (y + b2_ref[...]).astype(o_ref.dtype)


def prediction_mlp(x, w1, b1, gamma, beta, w2, b2, *, tile_b=128,
                   compute_dtype=jnp.bfloat16):
    """x: (B, in_dim) -> (B, out_dim) float32. Weights stored (in, out)."""
    del b1  # Cancels exactly under training-mode BatchNorm (see header).
    # TODO(synk): eval-mode BatchNorm (running stats) is not implemented; this
    # matches the PyTorch module's training-mode forward, as did the original.

    B, in_dim = x.shape
    mid_dim = w1.shape[1]
    out_dim = w2.shape[1]

    tile_b = min(tile_b, B)
    if B % tile_b != 0:
        raise ValueError(f"batch {B} must be a multiple of tile_b={tile_b}")
    nb = B // tile_b

    xc = x.astype(compute_dtype)
    w1c = w1.astype(compute_dtype)
    w2c = w2.astype(compute_dtype)
    gamma2 = gamma.reshape(1, mid_dim).astype(jnp.float32)
    beta2 = beta.reshape(1, mid_dim).astype(jnp.float32)
    b2r = b2.reshape(1, out_dim).astype(jnp.float32)

    kernel = functools.partial(prediction_mlp_kernel, tile_b=tile_b, batch=B)

    csize = jnp.dtype(compute_dtype).itemsize
    vmem_bytes = (
        B * mid_dim * 4                                    # persistent h scratch
        + 2 * mid_dim * 4                                  # BN stats scratch
        + (in_dim * mid_dim + mid_dim * out_dim) * csize   # resident weights
        + 2 * tile_b * in_dim * csize                      # x tile (dbl-buffered)
        + 2 * tile_b * out_dim * 4                         # out tile (dbl-buffered)
        + (2 * mid_dim + out_dim) * 4                      # gamma / beta / b2
    )
    vmem_limit = max(32 * 1024 * 1024, int(vmem_bytes * 1.5) + (4 << 20))

    grid_spec = pltpu.PrefetchScalarGridSpec(
        num_scalar_prefetch=0,
        grid=(2, nb),  # (phase, batch tile)
        in_specs=[
            # x: streamed per batch tile in phase 0; pinned to tile 0 in phase 1.
            pl.BlockSpec((tile_b, in_dim), lambda p, i: (i * (1 - p), 0)),
            # Weights / BN params / bias: resident in VMEM for the whole call.
            pl.BlockSpec((in_dim, mid_dim), lambda p, i: (0, 0)),
            pl.BlockSpec((1, mid_dim), lambda p, i: (0, 0)),
            pl.BlockSpec((1, mid_dim), lambda p, i: (0, 0)),
            pl.BlockSpec((mid_dim, out_dim), lambda p, i: (0, 0)),
            pl.BlockSpec((1, out_dim), lambda p, i: (0, 0)),
        ],
        # Output: lane-dense (out_dim multiple of 128) tiles, written in phase 1.
        out_specs=pl.BlockSpec((tile_b, out_dim), lambda p, i: (i * p, 0)),
        scratch_shapes=[
            pltpu.VMEM((B, mid_dim), jnp.float32),   # persistent h = x @ W1
            pltpu.VMEM((2, mid_dim), jnp.float32),   # [sum; sum of squares]
        ],
    )

    return pl.pallas_call(
        kernel,
        out_shape=jax.ShapeDtypeStruct((B, out_dim), jnp.float32),
        grid_spec=grid_spec,
        compiler_params=pltpu.CompilerParams(
            # Phase axis is sequential; batch-tile axis shares the BN-stat and
            # h scratch across tiles, so it must also be "arbitrary".
            dimension_semantics=("arbitrary", "arbitrary"),
            vmem_limit_bytes=vmem_limit,
        ),
    )(xc, w1c, gamma2, beta2, w2c, b2r)


def reference_forward(x, w1, b1, gamma, beta, w2, b2,
                      compute_dtype=jnp.bfloat16):
    """Pure-JAX reference mirroring the kernel's bf16 MXU inputs / f32 math.

    b1 is kept here to demonstrate it is a no-op under training-mode BN.
    """
    xc = x.astype(compute_dtype).astype(jnp.float32)
    w1c = w1.astype(compute_dtype).astype(jnp.float32)
    w2c = w2.astype(compute_dtype).astype(jnp.float32)
    h = xc @ w1c + b1.reshape(1, -1)
    mean = jnp.mean(h, axis=0, keepdims=True)
    var = jnp.mean((h - mean) ** 2, axis=0, keepdims=True)
    h = (h - mean) * jax.lax.rsqrt(var + BN_EPS)
    h = h * gamma.reshape(1, -1) + beta.reshape(1, -1)
    h = jnp.maximum(h, 0.0)
    h = h.astype(compute_dtype).astype(jnp.float32)
    return h @ w2c + b2.reshape(1, -1)


if __name__ == "__main__":
    # SimSiam predictor is typically (2048 -> 512 -> 2048) with large batches;
    # use lane-aligned small analogues (all dims multiples of 128).
    B, in_dim, mid_dim, out_dim = 256, 256, 128, 256

    key = jax.random.PRNGKey(0)
    kx, kw1, kb1, kw2, kb2, kg, kbt = jax.random.split(key, 7)

    x = jax.random.normal(kx, (B, in_dim), dtype=jnp.float32)

    s1 = 1.0 / jnp.sqrt(in_dim)
    w1 = jax.random.uniform(kw1, (in_dim, mid_dim), jnp.float32, -s1, s1)
    b1 = jax.random.uniform(kb1, (mid_dim,), jnp.float32, -s1, s1)
    gamma = 1.0 + 0.1 * jax.random.normal(kg, (mid_dim,), jnp.float32)
    beta = 0.1 * jax.random.normal(kbt, (mid_dim,), jnp.float32)
    s2 = 1.0 / jnp.sqrt(mid_dim)
    w2 = jax.random.uniform(kw2, (mid_dim, out_dim), jnp.float32, -s2, s2)
    b2 = jax.random.uniform(kb2, (out_dim,), jnp.float32, -s2, s2)

    out = prediction_mlp(x, w1, b1, gamma, beta, w2, b2, tile_b=128)
    out = jax.block_until_ready(out)

    ref = reference_forward(x, w1, b1, gamma, beta, w2, b2)
    assert out.shape == (B, out_dim)
    max_err = float(jnp.max(jnp.abs(out - ref)))
    assert jnp.allclose(out, ref, atol=2e-2, rtol=2e-2), f"mismatch: {max_err}"

    print("KERNEL_OK")
</pallas_src>

<mosaic_0001>
module attributes {stable_mosaic.version = 11 : i64} {
  func.func @prediction_mlp_kernel(%arg0: i32, %arg1: i32, %arg2: memref<128x256xbf16, #tpu.memory_space<vmem>>, %arg3: memref<256x128xbf16, #tpu.memory_space<vmem>>, %arg4: memref<1x128xf32, #tpu.memory_space<vmem>>, %arg5: memref<1x128xf32, #tpu.memory_space<vmem>>, %arg6: memref<128x256xbf16, #tpu.memory_space<vmem>>, %arg7: memref<1x256xf32, #tpu.memory_space<vmem>>, %arg8: memref<128x256xf32, #tpu.memory_space<vmem>>, %arg9: memref<256x128xf32, #tpu.memory_space<vmem>>, %arg10: memref<2x128xf32, #tpu.memory_space<vmem>>) attributes {dimension_semantics = [#tpu.dimension_semantics<arbitrary>, #tpu.dimension_semantics<arbitrary>], iteration_bounds = array<i64: 2, 2>, scalar_prefetch = 0 : i64, scratch_operands = 2 : i64, tpu.core_type = #tpu.core_type<tc>, window_params = [{transform_indices = @transform_0, window_bounds = array<i64: 128, 256>}, {pipeline_mode = #tpu.pipeline_mode<synchronous>, transform_indices = @transform_1, window_bounds = array<i64: 256, 128>}, {pipeline_mode = #tpu.pipeline_mode<synchronous>, transform_indices = @transform_2, window_bounds = array<i64: 1, 128>}, {pipeline_mode = #tpu.pipeline_mode<synchronous>, transform_indices = @transform_3, window_bounds = array<i64: 1, 128>}, {pipeline_mode = #tpu.pipeline_mode<synchronous>, transform_indices = @transform_4, window_bounds = array<i64: 128, 256>}, {pipeline_mode = #tpu.pipeline_mode<synchronous>, transform_indices = @transform_5, window_bounds = array<i64: 1, 256>}, {transform_indices = @transform_6, window_bounds = array<i64: 128, 256>}]} {
    %c128_i32 = arith.constant 128 : i32
    %0 = arith.muli %arg1, %c128_i32 : i32
    %1 = tpu.assume_multiple %0, 128 : i32
    %c0_i32 = arith.constant 0 : i32
    %2 = arith.cmpi eq, %arg0, %c0_i32 : i32
    %3 = arith.extui %2 : i1 to i32
    %c0_i32_0 = arith.constant 0 : i32
    %4 = arith.cmpi ne, %3, %c0_i32_0 : i32
    scf.if %4 {
      %c0_i32_2 = arith.constant 0 : i32
      %8 = arith.cmpi eq, %arg1, %c0_i32_2 : i32
      %9 = arith.extui %8 : i1 to i32
      %c0_i32_3 = arith.constant 0 : i32
      %10 = arith.cmpi ne, %9, %c0_i32_3 : i32
      scf.if %10 {
        %cst_17 = arith.constant 0.000000e+00 : f32
        %27 = vector.broadcast %cst_17 : f32 to vector<2x128xf32>
        %c0_18 = arith.constant 0 : index
        %c0_19 = arith.constant 0 : index
        %28 = vector.load %arg10[%c0_18, %c0_19] : memref<2x128xf32, #tpu.memory_space<vmem>>, vector<2x128xf32>
        tpu.vector_store %arg10[%c0_18, %c0_19], %27 {strides = array<i32>} : memref<2x128xf32, #tpu.memory_space<vmem>>, vector<2x128xf32>,
      } else {
      }
      %c0 = arith.constant 0 : index
      %c0_4 = arith.constant 0 : index
      %11 = vector.load %arg2[%c0, %c0_4] : memref<128x256xbf16, #tpu.memory_space<vmem>>, vector<128x256xbf16>
      %c0_5 = arith.constant 0 : index
      %c0_6 = arith.constant 0 : index
      %12 = vector.load %arg3[%c0_5, %c0_6] : memref<256x128xbf16, #tpu.memory_space<vmem>>, vector<256x128xbf16>
      %cst = arith.constant dense<0.000000e+00> : vector<128x128xf32>
      %13 = tpu.matmul %11, %12, %cst {dimension_numbers = #tpu.dot_dimension_numbers<[1], [0], [0], [1], [0, 0, 1, 1], [], []>} : vector<128x256xbf16>, vector<256x128xbf16>, vector<128x128xf32> -> vector<128x128xf32>
      %14 = arith.index_cast %1 : i32 to index
      %c0_7 = arith.constant 0 : index
      %15 = vector.load %arg9[%14, %c0_7] : memref<256x128xf32, #tpu.memory_space<vmem>>, vector<128x128xf32>
      tpu.vector_store %arg9[%14, %c0_7], %13 {strides = array<i32>} : memref<256x128xf32, #tpu.memory_space<vmem>>, vector<128x128xf32>,
      %c0_8 = arith.constant 0 : index
      %c0_9 = arith.constant 0 : index
      %16 = vector.load %arg10[%c0_8, %c0_9] : memref<2x128xf32, #tpu.memory_space<vmem>>, vector<1x128xf32>
      %cst_10 = arith.constant dense<0.000000e+00> : vector<128xf32>
      %17 = vector.multi_reduction <add>, %13, %cst_10 [0] : vector<128x128xf32> to vector<128xf32>
      %18 = vector.shape_cast %17 : vector<128xf32> to vector<1x128xf32>
      %19 = arith.addf %16, %18 : vector<1x128xf32>
      %c0_11 = arith.constant 0 : index
      %c0_12 = arith.constant 0 : index
      %20 = vector.load %arg10[%c0_11, %c0_12] : memref<2x128xf32, #tpu.memory_space<vmem>>, vector<1x128xf32>
      tpu.vector_store %arg10[%c0_11, %c0_12], %19 {strides = array<i32>} : memref<2x128xf32, #tpu.memory_space<vmem>>, vector<1x128xf32>,
      %c1 = arith.constant 1 : index
      %c0_13 = arith.constant 0 : index
      %21 = vector.load %arg10[%c1, %c0_13] : memref<2x128xf32, #tpu.memory_space<vmem>>, vector<1x128xf32>
      %22 = arith.mulf %13, %13 : vector<128x128xf32>
      %cst_14 = arith.constant dense<0.000000e+00> : vector<128xf32>
      %23 = vector.multi_reduction <add>, %22, %cst_14 [0] : vector<128x128xf32> to vector<128xf32>
      %24 = vector.shape_cast %23 : vector<128xf32> to vector<1x128xf32>
      %25 = arith.addf %21, %24 : vector<1x128xf32>
      %c1_15 = arith.constant 1 : index
      %c0_16 = arith.constant 0 : index
      %26 = vector.load %arg10[%c1_15, %c0_16] : memref<2x128xf32, #tpu.memory_space<vmem>>, vector<1x128xf32>
      tpu.vector_store %arg10[%c1_15, %c0_16], %25 {strides = array<i32>} : memref<2x128xf32, #tpu.memory_space<vmem>>, vector<1x128xf32>,
    } else {
    }
    %c1_i32 = arith.constant 1 : i32
    %5 = arith.cmpi eq, %arg0, %c1_i32 : i32
    %6 = arith.extui %5 : i1 to i32
    %c0_i32_1 = arith.constant 0 : i32
    %7 = arith.cmpi ne, %6, %c0_i32_1 : i32
    scf.if %7 {
      %c0 = arith.constant 0 : index
      %c0_2 = arith.constant 0 : index
      %8 = vector.load %arg10[%c0, %c0_2] : memref<2x128xf32, #tpu.memory_space<vmem>>, vector<1x128xf32>
      %cst = arith.constant 3.906250e-03 : f32
      %9 = vector.broadcast %cst : f32 to vector<1x128xf32>
      %10 = arith.mulf %8, %9 : vector<1x128xf32>
      %c1 = arith.constant 1 : index
      %c0_3 = arith.constant 0 : index
      %11 = vector.load %arg10[%c1, %c0_3] : memref<2x128xf32, #tpu.memory_space<vmem>>, vector<1x128xf32>
      %cst_4 = arith.constant 3.906250e-03 : f32
      %12 = vector.broadcast %cst_4 : f32 to vector<1x128xf32>
      %13 = arith.mulf %11, %12 : vector<1x128xf32>
      %14 = arith.mulf %10, %10 : vector<1x128xf32>
      %15 = arith.subf %13, %14 : vector<1x128xf32>
      %cst_5 = arith.constant 0.000000e+00 : f32
      %16 = vector.broadcast %cst_5 : f32 to vector<1x128xf32>
      %17 = arith.maximumf %15, %16 : vector<1x128xf32>
      %c0_6 = arith.constant 0 : index
      %c0_7 = arith.constant 0 : index
      %18 = vector.load %arg4[%c0_6, %c0_7] : memref<1x128xf32, #tpu.memory_space<vmem>>, vector<1x128xf32>
      %cst_8 = arith.constant 9.99999974E-6 : f32
      %19 = vector.broadcast %cst_8 : f32 to vector<1x128xf32>
      %20 = arith.addf %17, %19 : vector<1x128xf32>
      %21 = math.rsqrt %20 : vector<1x128xf32>
      %22 = arith.mulf %18, %21 : vector<1x128xf32>
      %c0_9 = arith.constant 0 : index
      %c0_10 = arith.constant 0 : index
      %23 = vector.load %arg5[%c0_9, %c0_10] : memref<1x128xf32, #tpu.memory_space<vmem>>, vector<1x128xf32>
      %24 = arith.mulf %10, %22 : vector<1x128xf32>
      %25 = arith.subf %23, %24 : vector<1x128xf32>
      %26 = arith.index_cast %1 : i32 to index
      %c0_11 = arith.constant 0 : index
      %27 = vector.load %arg9[%26, %c0_11] : memref<256x128xf32, #tpu.memory_space<vmem>>, vector<128x128xf32>
      %28 = vector.broadcast %22 : vector<1x128xf32> to vector<128x128xf32>
      %29 = arith.mulf %27, %28 : vector<128x128xf32>
      %30 = vector.broadcast %25 : vector<1x128xf32> to vector<128x128xf32>
      %31 = arith.addf %29, %30 : vector<128x128xf32>
      %cst_12 = arith.constant 0.000000e+00 : f32
      %32 = vector.broadcast %cst_12 : f32 to vector<128x128xf32>
      %33 = arith.maximumf %31, %32 : vector<128x128xf32>
      %34 = arith.truncf %33 : vector<128x128xf32> to vector<128x128xbf16>
      %c0_13 = arith.constant 0 : index
      %c0_14 = arith.constant 0 : index
      %35 = vector.load %arg6[%c0_13, %c0_14] : memref<128x256xbf16, #tpu.memory_space<vmem>>, vector<128x256xbf16>
      %cst_15 = arith.constant dense<0.000000e+00> : vector<128x256xf32>
      %36 = tpu.matmul %34, %35, %cst_15 {dimension_numbers = #tpu.dot_dimension_numbers<[1], [0], [0], [1], [0, 0, 1, 1], [], []>} : vector<128x128xbf16>, vector<128x256xbf16>, vector<128x256xf32> -> vector<128x256xf32>
      %c0_16 = arith.constant 0 : index
      %c0_17 = arith.constant 0 : index
      %37 = vector.load %arg7[%c0_16, %c0_17] : memref<1x256xf32, #tpu.memory_space<vmem>>, vector<1x256xf32>
      %38 = vector.broadcast %37 : vector<1x256xf32> to vector<128x256xf32>
      %39 = arith.addf %36, %38 : vector<128x256xf32>
      %c0_18 = arith.constant 0 : index
      %c0_19 = arith.constant 0 : index
      %40 = vector.load %arg8[%c0_18, %c0_19] : memref<128x256xf32, #tpu.memory_space<vmem>>, vector<128x256xf32>
      tpu.vector_store %arg8[%c0_18, %c0_19], %39 {strides = array<i32>} : memref<128x256xf32, #tpu.memory_space<vmem>>, vector<128x256xf32>,
    } else {
    }
    return
  }
  func.func @transform_0(%arg0: i32, %arg1: i32) -> (i32, i32) {
    %c1_i32 = arith.constant 1 : i32
    %0 = arith.subi %c1_i32, %arg0 : i32
    %1 = arith.muli %arg1, %0 : i32
    %c0_i32 = arith.constant 0 : i32
    %c0_i32_0 = arith.constant 0 : i32
    return %1, %c0_i32 : i32, i32
  }
  func.func @transform_1(%arg0: i32, %arg1: i32) -> (i32, i32) {
    %c0_i32 = arith.constant 0 : i32
    %c0_i32_0 = arith.constant 0 : i32
    %c0_i32_1 = arith.constant 0 : i32
    return %c0_i32, %c0_i32_0 : i32, i32
  }
  func.func @transform_2(%arg0: i32, %arg1: i32) -> (i32, i32) {
    %c0_i32 = arith.constant 0 : i32
    %c0_i32_0 = arith.constant 0 : i32
    %c0_i32_1 = arith.constant 0 : i32
    return %c0_i32, %c0_i32_0 : i32, i32
  }
  func.func @transform_3(%arg0: i32, %arg1: i32) -> (i32, i32) {
    %c0_i32 = arith.constant 0 : i32
    %c0_i32_0 = arith.constant 0 : i32
    %c0_i32_1 = arith.constant 0 : i32
    return %c0_i32, %c0_i32_0 : i32, i32
  }
  func.func @transform_4(%arg0: i32, %arg1: i32) -> (i32, i32) {
    %c0_i32 = arith.constant 0 : i32
    %c0_i32_0 = arith.constant 0 : i32
    %c0_i32_1 = arith.constant 0 : i32
    return %c0_i32, %c0_i32_0 : i32, i32
  }
  func.func @transform_5(%arg0: i32, %arg1: i32) -> (i32, i32) {
    %c0_i32 = arith.constant 0 : i32
    %c0_i32_0 = arith.constant 0 : i32
    %c0_i32_1 = arith.constant 0 : i32
    return %c0_i32, %c0_i32_0 : i32, i32
  }
  func.func @transform_6(%arg0: i32, %arg1: i32) -> (i32, i32) {
    %0 = arith.muli %arg1, %arg0 : i32
    %c0_i32 = arith.constant 0 : i32
    %c0_i32_0 = arith.constant 0 : i32
    return %0, %c0_i32 : i32, i32
  }
}

</mosaic_0001>

<llo_original>
// kernel: tpu_custom_call.1
$region0: #{tpu_custom_call.1}
  #allocation0 [shape = 'u32[]', space=smem, size = 0x4, offset = 0x4, fixed_abs, tag = 'smem constant byte address 0x4 - core index']
  #allocation1 [shape = 'u32[144,128]{1,0:T(1,128)}', space=vmem, size = 0x12000, scoped, tag = 'internal scratch']
  #allocation2 [shape = 'f32[256,128]{1,0:T(8,128)}', space=vmem, size = 0x20000, scoped, tag = 'scratch operand']
  #allocation3 [shape = 'f32[2,128]{1,0:T(2,128)}', space=vmem, size = 0x400, scoped, tag = 'scratch operand']
  %s0 = inlined_call_operand.hbm [shape: bf16[256,256], index: 0, kind: input, shape index: {}]
  %s1 = inlined_call_operand.hbm [shape: bf16[256,128], index: 1, kind: input, shape index: {}]
  %s2 = inlined_call_operand.vmem [shape: f32[1,128], index: 2, kind: input, shape index: {}]
  %s3 = inlined_call_operand.vmem [shape: f32[1,128], index: 3, kind: input, shape index: {}]
  %s4 = inlined_call_operand.hbm [shape: bf16[128,256], index: 4, kind: input, shape index: {}]
  %s5 = inlined_call_operand.vmem [shape: f32[1,256], index: 5, kind: input, shape index: {}]
  %s6 = inlined_call_operand.hbm [shape: f32[256,256], index: 6, kind: output, shape index: {}]
  %s7 = sld [smem:[#allocation0]]
  $region81: #{tpu_custom_call.1} parent=0
    _
  %s9 = ssub.s32 1, %s7
  %s10 = scalar_select 0, %s9, %s7
  $region1: #{tpu_custom_call.1} parent=0
    #allocation4 [shape = 'u8[131072]{0}', space=vmem, size = 0x20000, scoped, tag = 'input window, operand 0']
    #allocation5 [shape = 's32[2]{0}', space=sflag, size = 0x8, scoped, tag = 'scoped memory for tpu_custom_call.1']
    #allocation6 [shape = 's32[2]{0}', space=sflag, size = 0x8, scoped, tag = 'scoped memory for tpu_custom_call.1']
    #allocation7 [shape = 'u8[65536]{0}', space=vmem, size = 0x10000, scoped, tag = 'input window, operand 1, single buffered']
    #allocation8 [shape = 's32[1]{0}', space=sflag, size = 0x4, scoped, tag = 'scoped memory for tpu_custom_call.1']
    #allocation9 [shape = 'u8[65536]{0}', space=vmem, size = 0x10000, scoped, tag = 'input window, operand 4, single buffered']
    #allocation10 [shape = 'u8[262144]{0}', space=vmem, size = 0x40000, scoped, tag = 'output window, operand 0']
    %11 = vsyncpa [#allocation5], 0
    %s12 = scalar_lea.sflag [#allocation5], 1
    %13 = vsyncpa %s12, 0
    %14 = vsyncpa [#allocation8], 0
    %15 = vsyncpa [#allocation6], 0
    %s16 = scalar_lea.sflag [#allocation6], 1
    %17 = vsyncpa %s16, 0
    loop: start=0, step=1, limit=6
    $region2: #{tpu_custom_call.1} parent=1 // loop_pre_header
      _
    $region3: #{tpu_custom_call.1} parent=1 // loop_header
      %s19 = sphi 0, %s23
      %p20 = scmp.ge.s32.totalorder %s19, 6
      %s26 = sphi 0, %s38
      %s27 = sphi 0, %s34
      %s28 = sphi 0, %s26
      %s29 = sphi 0, %s27
      %s30 = sphi 0, %s28
      %s31 = sphi 0, %s29
      %s45 = sphi 0, %s47
      %s48 = sphi 0, %s45
      %s49 = sphi 0, %s48
      %s65 = sphi 0, %s49
      %s69 = sphi 0, %s69
      %s71 = sphi 0, %s69
      %s72 = sphi 0, %s71
      %s86 = sphi 0, %s72
      %s90 = sphi 0, %s90
      %s92 = sphi 0, %s90
      %s93 = sphi 0, %s92
      %s107 = sphi 0, %s93
      %s111 = sphi 0, %s111
      %s113 = sphi 0, %s111
      %s114 = sphi 0, %s113
      %s128 = sphi 0, %s114
      %s132 = sphi 0, %s132
      %s134 = sphi 0, %s132
      %s135 = sphi 0, %s134
      %s149 = sphi 0, %s135
      %s153 = sphi 0, %s153
      %s155 = sphi 0, %s153
      %s156 = sphi 0, %s155
      %s170 = sphi 0, %s156
      %s178 = sphi 0, %s180
      %s181 = sphi 0, %s178
      %s182 = sphi 0, %s181
      %s198 = sphi 0, %s182
    $region4: #{tpu_custom_call.1} parent=1 // loop_header_branch
      %22 = sbr.rel (%p20) target = $region8
    $region5: #{tpu_custom_call.1} parent=1 // loop_body
      %s24 = ssub.s32 %s19, 1
      %s25 = ssub.s32 %s19, 2
      %s32 = sadd.s32 1, %s27
      %p33 = scmp.ge.s32.totalorder %s32, 2
      %s34 = scalar_select %p33, 0, %s32
      %s35 = sadd.s32 1, %s26
      %s36 = scalar_select %p33, %s35, %s26
      %p37 = scmp.ge.s32.totalorder %s36, 2
      %s38 = scalar_select %p37, 0, %s36
      %s39 = ssub.s32 1, %s26
      %s40 = smul.u32 %s27, %s39
      %s41 = ssub.s32 1, %s38
      %s42 = smul.u32 %s34, %s41
      %s43 = ssub.s32 %s40, %s42
      %p44 = scmp.eq.s32.totalorder %s43, 0
      %s46 = sadd.s32 %s45, 1
      %s47 = scalar_select %p44, %s45, %s46
      %p50 = pneg %p44
      %p51 = scmp.eq.s32.totalorder %s19, 3
      %p52 = por %p50, %p51
      %p53 = scmp.ne.s32.totalorder %s45, %s48
      %p54 = scmp.eq.s32.totalorder %s19, 0
      %p55 = por %p53, %p54
      %p56 = scmp.ne.s32.totalorder %s45, %s48
      %p57 = scmp.eq.s32.totalorder %s24, 3
      %p58 = por %p56, %p57
      %p59 = scmp.ne.s32.totalorder %s48, %s49
      %p60 = scmp.eq.s32.totalorder %s24, 0
      %p61 = por %p59, %p60
      %p62 = scmp.ne.s32.totalorder %s48, %s49
      %p63 = scmp.eq.s32.totalorder %s25, 3
      %p64 = por %p62, %p63
      %p66 = scmp.ne.s32.totalorder %s49, %s65
      %p67 = scmp.eq.s32.totalorder %s25, 0
      %p68 = por %p66, %p67
      %s70 = sadd.s32 %s69, 1
      %p73 = scmp.eq.s32.totalorder %s19, 3
      %p74 = scmp.ne.s32.totalorder %s69, %s71
      %p75 = scmp.eq.s32.totalorder %s19, 0
      %p76 = por %p74, %p75
      %p77 = scmp.ne.s32.totalorder %s69, %s71
      %p78 = scmp.eq.s32.totalorder %s24, 3
      %p79 = por %p77, %p78
      %p80 = scmp.ne.s32.totalorder %s71, %s72
      %p81 = scmp.eq.s32.totalorder %s24, 0
      %p82 = por %p80, %p81
      %p83 = scmp.ne.s32.totalorder %s71, %s72
      %p84 = scmp.eq.s32.totalorder %s25, 3
      %p85 = por %p83, %p84
      %p87 = scmp.ne.s32.totalorder %s72, %s86
      %p88 = scmp.eq.s32.totalorder %s25, 0
      %p89 = por %p87, %p88
      %s91 = sadd.s32 %s90, 1
      %p94 = scmp.eq.s32.totalorder %s19, 3
      %p95 = scmp.ne.s32.totalorder %s90, %s92
      %p96 = scmp.eq.s32.totalorder %s19, 0
      %p97 = por %p95, %p96
      %p98 = scmp.ne.s32.totalorder %s90, %s92
      %p99 = scmp.eq.s32.totalorder %s24, 3
      %p100 = por %p98, %p99
      %p101 = scmp.ne.s32.totalorder %s92, %s93
      %p102 = scmp.eq.s32.totalorder %s24, 0
      %p103 = por %p101, %p102
      %p104 = scmp.ne.s32.totalorder %s92, %s93
      %p105 = scmp.eq.s32.totalorder %s25, 3
      %p106 = por %p104, %p105
      %p108 = scmp.ne.s32.totalorder %s93, %s107
      %p109 = scmp.eq.s32.totalorder %s25, 0
      %p110 = por %p108, %p109
      %s112 = sadd.s32 %s111, 1
      %p115 = scmp.eq.s32.totalorder %s19, 3
      %p116 = scmp.ne.s32.totalorder %s111, %s113
      %p117 = scmp.eq.s32.totalorder %s19, 0
      %p118 = por %p116, %p117
      %p119 = scmp.ne.s32.totalorder %s111, %s113
      %p120 = scmp.eq.s32.totalorder %s24, 3
      %p121 = por %p119, %p120
      %p122 = scmp.ne.s32.totalorder %s113, %s114
      %p123 = scmp.eq.s32.totalorder %s24, 0
      %p124 = por %p122, %p123
      %p125 = scmp.ne.s32.totalorder %s113, %s114
      %p126 = scmp.eq.s32.totalorder %s25, 3
      %p127 = por %p125, %p126
      %p129 = scmp.ne.s32.totalorder %s114, %s128
      %p130 = scmp.eq.s32.totalorder %s25, 0
      %p131 = por %p129, %p130
      %s133 = sadd.s32 %s132, 1
      %p136 = scmp.eq.s32.totalorder %s19, 3
      %p137 = scmp.ne.s32.totalorder %s132, %s134
      %p138 = scmp.eq.s32.totalorder %s19, 0
      %p139 = por %p137, %p138
      %p140 = scmp.ne.s32.totalorder %s132, %s134
      %p141 = scmp.eq.s32.totalorder %s24, 3
      %p142 = por %p140, %p141
      %p143 = scmp.ne.s32.totalorder %s134, %s135
      %p144 = scmp.eq.s32.totalorder %s24, 0
      %p145 = por %p143, %p144
      %p146 = scmp.ne.s32.totalorder %s134, %s135
      %p147 = scmp.eq.s32.totalorder %s25, 3
      %p148 = por %p146, %p147
      %p150 = scmp.ne.s32.totalorder %s135, %s149
      %p151 = scmp.eq.s32.totalorder %s25, 0
      %p152 = por %p150, %p151
      %s154 = sadd.s32 %s153, 1
      %p157 = scmp.eq.s32.totalorder %s19, 3
      %p158 = scmp.ne.s32.totalorder %s153, %s155
      %p159 = scmp.eq.s32.totalorder %s19, 0
      %p160 = por %p158, %p159
      %p161 = scmp.ne.s32.totalorder %s153, %s155
      %p162 = scmp.eq.s32.totalorder %s24, 3
      %p163 = por %p161, %p162
      %p164 = scmp.ne.s32.totalorder %s155, %s156
      %p165 = scmp.eq.s32.totalorder %s24, 0
      %p166 = por %p164, %p165
      %p167 = scmp.ne.s32.totalorder %s155, %s156
      %p168 = scmp.eq.s32.totalorder %s25, 3
      %p169 = por %p167, %p168
      %p171 = scmp.ne.s32.totalorder %s156, %s170
      %p172 = scmp.eq.s32.totalorder %s25, 0
      %p173 = por %p171, %p172
      %s174 = smul.u32 %s27, %s26
      %s175 = smul.u32 %s34, %s38
      %s176 = ssub.s32 %s174, %s175
      %p177 = scmp.eq.s32.totalorder %s176, 0
      %s179 = sadd.s32 %s178, 1
      %s180 = scalar_select %p177, %s178, %s179
      %p183 = pneg %p177
      %p184 = scmp.eq.s32.totalorder %s19, 3
      %p185 = por %p183, %p184
      %p186 = scmp.ne.s32.totalorder %s178, %s181
      %p187 = scmp.eq.s32.totalorder %s19, 0
      %p188 = por %p186, %p187
      %p189 = scmp.ne.s32.totalorder %s178, %s181
      %p190 = scmp.eq.s32.totalorder %s24, 3
      %p191 = por %p189, %p190
      %p192 = scmp.ne.s32.totalorder %s181, %s182
      %p193 = scmp.eq.s32.totalorder %s24, 0
      %p194 = por %p192, %p193
      %p195 = scmp.ne.s32.totalorder %s181, %s182
      %p196 = scmp.eq.s32.totalorder %s25, 3
      %p197 = por %p195, %p196
      %p199 = scmp.ne.s32.totalorder %s182, %s198
      %p200 = scmp.eq.s32.totalorder %s25, 0
      %p201 = por %p199, %p200
      %p202 = scmp.le.s32.totalorder 1, %s19
      %p203 = scmp.lt.s32.totalorder %s19, 5
      %p204 = pnand %p202, %p203
      %p205 = pneg %p204
      // Predicated region
      $region9: #{tpu_custom_call.1} parent=5 // pred_check
        _
      $region10: #{tpu_custom_call.1} parent=5 // pred_check_branch
        %207 = sbr.rel (%p204) target = $region12
      $region11: #{tpu_custom_call.1} parent=5 // pred_region
        %s208 = ssub.s32 %s19, 1
        // Predicated region
        $region13: #{tpu_custom_call.1} parent=11 // pred_check
          %p209 = pneg %p82
        $region14: #{tpu_custom_call.1} parent=11 // pred_check_branch
          %211 = sbr.rel (%p209) target = $region16
        $region15: #{tpu_custom_call.1} parent=11 // pred_region
          %s213 = ssub.s32 2048, 2048
          %214 = vsyncadd [#allocation8], %s213
          %s215 = sshll.u32 [#allocation7], 4
          %s216 = int_to_ptr.vmem [resolvable:$true] %s215
          %221 = dma.hbm_to_vmem [thread:$0]  %s1, 2048, %s216, [#allocation8], 64, 64, 4
        $region16: #{tpu_custom_call.1} parent=11 // pred_fallthru
          _
        // Predicated region
        $region17: #{tpu_custom_call.1} parent=11 // pred_check
          %p222 = pneg %p103
        $region18: #{tpu_custom_call.1} parent=11 // pred_check_branch
          %224 = sbr.rel (%p222) target = $region20
        $region19: #{tpu_custom_call.1} parent=11 // pred_region
          _
        $region20: #{tpu_custom_call.1} parent=11 // pred_fallthru
          _
        // Predicated region
        $region21: #{tpu_custom_call.1} parent=11 // pred_check
          %p225 = pneg %p124
        $region22: #{tpu_custom_call.1} parent=11 // pred_check_branch
          %227 = sbr.rel (%p225) target = $region24
        $region23: #{tpu_custom_call.1} parent=11 // pred_region
          _
        $region24: #{tpu_custom_call.1} parent=11 // pred_fallthru
          _
        // Predicated region
        $region25: #{tpu_custom_call.1} parent=11 // pred_check
          %p228 = pneg %p145
        $region26: #{tpu_custom_call.1} parent=11 // pred_check_branch
          %230 = sbr.rel (%p228) target = $region28
        $region27: #{tpu_custom_call.1} parent=11 // pred_region
          %s232 = ssub.s32 2048, 2048
          %233 = vsyncadd [#allocation8], %s232
          %s234 = sshll.u32 [#allocation9], 4
          %s235 = int_to_ptr.vmem [resolvable:$true] %s234
          %240 = dma.hbm_to_vmem [thread:$0]  %s4, 2048, %s235, [#allocation8], 128, 128, 8
        $region28: #{tpu_custom_call.1} parent=11 // pred_fallthru
          _
        // Predicated region
        $region29: #{tpu_custom_call.1} parent=11 // pred_check
          %p241 = pneg %p166
        $region30: #{tpu_custom_call.1} parent=11 // pred_check_branch
          %243 = sbr.rel (%p241) target = $region32
        $region31: #{tpu_custom_call.1} parent=11 // pred_region
          _
        $region32: #{tpu_custom_call.1} parent=11 // pred_fallthru
          _
      $region12: #{tpu_custom_call.1} parent=5 // pred_fallthru
        _
      %p244 = scmp.lt.s32.totalorder %s19, 4
      // Predicated region
      $region33: #{tpu_custom_call.1} parent=5 // pred_check
        %p245 = pneg %p244
      $region34: #{tpu_custom_call.1} parent=5 // pred_check_branch
        %247 = sbr.rel (%p245) target = $region36
      $region35: #{tpu_custom_call.1} parent=5 // pred_region
        // Predicated region
        $region37: #{tpu_custom_call.1} parent=35 // pred_check
          %p248 = pneg %p55
        $region38: #{tpu_custom_call.1} parent=35 // pred_check_branch
          %250 = sbr.rel (%p248) target = $region40
        $region39: #{tpu_custom_call.1} parent=35 // pred_region
          %s251 = sand.u32 %s45, 1
          %s252 = scalar_lea.sflag [#allocation5], %s251
          %s253 = sand.u32 %s45, 1
          %s254 = smul.addr %s253, 128
          %s255 = scalar_lea.vmem [#allocation4], %s254
          %s256 = ssub.s32 1, %s26
          %s257 = smul.u32 %s27, %s256
          %s258 = smul.u32 16, %s257
          %s260 = ssub.s32 2048, 2048
          %261 = vsyncadd %s252, %s260
          %s262 = smul.addr %s258, 2
          %s263 = smul.addr %s262, 64
          %s264 = scalar_lea.hbm %s0, %s263
          %s265 = sshll.u32 %s255, 4
          %s266 = int_to_ptr.vmem [resolvable:$true] %s265
          %271 = dma.hbm_to_vmem [thread:$0]  %s264, 2048, %s266, %s252, 128, 128, 8
        $region40: #{tpu_custom_call.1} parent=35 // pred_fallthru
          _
      $region36: #{tpu_custom_call.1} parent=5 // pred_fallthru
        _
      %p272 = scmp.le.s32.totalorder 1, %s19
      %p273 = scmp.lt.s32.totalorder %s19, 5
      %p274 = pnand %p272, %p273
      %p275 = pneg %p274
      // Predicated region
      $region41: #{tpu_custom_call.1} parent=5 // pred_check
        _
      $region42: #{tpu_custom_call.1} parent=5 // pred_check_branch
        %277 = sbr.rel (%p274) target = $region44
      $region43: #{tpu_custom_call.1} parent=5 // pred_region
        %s278 = ssub.s32 %s19, 1
        %s279 = sand.u32 %s48, 1
        %s280 = scalar_lea.sflag [#allocation5], %s279
        %s281 = sand.u32 %s48, 1
        %s282 = smul.addr %s281, 128
        %s283 = scalar_lea.vmem [#allocation4], %s282
        // Predicated region
        $region45: #{tpu_custom_call.1} parent=43 // pred_check
          %p284 = pneg %p61
        $region46: #{tpu_custom_call.1} parent=43 // pred_check_branch
          %286 = sbr.rel (%p284) target = $region48
        $region47: #{tpu_custom_call.1} parent=43 // pred_region
          %287 = dma.done %s280, 2048
        $region48: #{tpu_custom_call.1} parent=43 // pred_fallthru
          _
        // Predicated region
        $region49: #{tpu_custom_call.1} parent=43 // pred_check
          %p288 = pneg %p82
        $region50: #{tpu_custom_call.1} parent=43 // pred_check_branch
          %290 = sbr.rel (%p288) target = $region52
        $region51: #{tpu_custom_call.1} parent=43 // pred_region
          %291 = dma.done [#allocation8], 2048
        $region52: #{tpu_custom_call.1} parent=43 // pred_fallthru
          _
        // Predicated region
        $region53: #{tpu_custom_call.1} parent=43 // pred_check
          %p292 = pneg %p145
        $region54: #{tpu_custom_call.1} parent=43 // pred_check_branch
          %294 = sbr.rel (%p292) target = $region56
        $region55: #{tpu_custom_call.1} parent=43 // pred_region
          %295 = dma.done [#allocation8], 2048
        $region56: #{tpu_custom_call.1} parent=43 // pred_fallthru
          _
        %s296 = sand.u32 %s48, 1
        %s297 = scalar_lea.sflag [#allocation5], %s296
        %s298 = sand.u32 %s48, 1
        %s299 = smul.addr %s298, 128
        %s300 = scalar_lea.vmem [#allocation4], %s299
        %p301 = pneg %p61
        %p302 = pneg %p58
        %p303 = pneg %p82
        %p304 = pneg %p79
        %p305 = pneg %p103
        %p306 = pneg %p100
        %p307 = pneg %p124
        %p308 = pneg %p121
        %p309 = pneg %p145
        %p310 = pneg %p142
        %p311 = pneg %p166
        %p312 = pneg %p163
        %p313 = pneg %p194
        %p314 = pneg %p191
        %s315 = sand.u32 %s181, 1
        %s316 = scalar_lea.sflag [#allocation6], %s315
        %s317 = sand.u32 %s181, 1
        %s318 = smul.addr %s317, 256
        %s319 = scalar_lea.vmem [#allocation10], %s318
        %s320 = ssub.s32 1, %s28
        %s321 = smul.u32 %s29, %s320
        %s322 = smul.u32 16, %s321
        %s323 = smul.u32 %s29, %s28
        %s324 = smul.u32 16, %s323
        %s326 = smul.u32 %s29, 128
        %p327 = scmp.eq.s32.totalorder %s28, 0
        // Predicated region
        $region57: #{tpu_custom_call.1} parent=43 // pred_check
          %p328 = pneg %p327
        $region58: #{tpu_custom_call.1} parent=43 // pred_check_branch
          %330 = sbr.rel (%p328) target = $region60
        $region59: #{tpu_custom_call.1} parent=43 // pred_region
          %p331 = scmp.eq.s32.totalorder %s29, 0
          // Predicated region
          $region61: #{tpu_custom_call.1} parent=59 // pred_check
            %p332 = pneg %p331
          $region62: #{tpu_custom_call.1} parent=59 // pred_check_branch
            %334 = sbr.rel (%p332) target = $region64
          $region63: #{tpu_custom_call.1} parent=59 // pred_region
            %335 = vst [vmem:[#allocation3] sm:$0x3] 0.0
          $region64: #{tpu_custom_call.1} parent=59 // pred_fallthru
            _
          %v336 = vld [vmem:[%s283] sm:$0xff]
          %v337 = vld [vmem:[%s283 + $0x8] sm:$0xff]
          %v338 = vld [vmem:[%s283 + $0x10] sm:$0xff]
          %v339 = vld [vmem:[%s283 + $0x18] sm:$0xff]
          %v340 = vld [vmem:[%s283 + $0x20] sm:$0xff]
          %v341 = vld [vmem:[%s283 + $0x28] sm:$0xff]
          %v342 = vld [vmem:[%s283 + $0x30] sm:$0xff]
          %v343 = vld [vmem:[%s283 + $0x38] sm:$0xff]
          %v344 = vld [vmem:[%s283 + $0x40] sm:$0xff]
          %v345 = vld [vmem:[%s283 + $0x48] sm:$0xff]
          %v346 = vld [vmem:[%s283 + $0x50] sm:$0xff]
          %v347 = vld [vmem:[%s283 + $0x58] sm:$0xff]
          %v348 = vld [vmem:[%s283 + $0x60] sm:$0xff]
          %v349 = vld [vmem:[%s283 + $0x68] sm:$0xff]
          %v350 = vld [vmem:[%s283 + $0x70] sm:$0xff]
          %v351 = vld [vmem:[%s283 + $0x78] sm:$0xff]
          %v352 = vld [vmem:[#allocation7] sm:$0xf]
          %v353 = vld [vmem:[#allocation7 + $0x4] sm:$0xf]
          %v354 = vld [vmem:[#allocation7 + $0x8] sm:$0xf]
          %v355 = vld [vmem:[#allocation7 + $0xc] sm:$0xf]
          %v356 = vld [vmem:[#allocation7 + $0x10] sm:$0xf]
          %v357 = vld [vmem:[#allocation7 + $0x14] sm:$0xf]
          %v358 = vld [vmem:[#allocation7 + $0x18] sm:$0xf]
          %v359 = vld [vmem:[#allocation7 + $0x1c] sm:$0xf]
          %v360 = vld [vmem:[#allocation7 + $0x20] sm:$0xf]
          %v361 = vld [vmem:[#allocation7 + $0x24] sm:$0xf]
          %v362 = vld [vmem:[#allocation7 + $0x28] sm:$0xf]
          %v363 = vld [vmem:[#allocation7 + $0x2c] sm:$0xf]
          %v364 = vld [vmem:[#allocation7 + $0x30] sm:$0xf]
          %v365 = vld [vmem:[#allocation7 + $0x34] sm:$0xf]
          %v366 = vld [vmem:[#allocation7 + $0x38] sm:$0xf]
          %v367 = vld [vmem:[#allocation7 + $0x3c] sm:$0xf]
          %v368 = vld [vmem:[#allocation7 + $0x40] sm:$0xf]
          %v369 = vld [vmem:[#allocation7 + $0x44] sm:$0xf]
          %v370 = vld [vmem:[#allocation7 + $0x48] sm:$0xf]
          %v371 = vld [vmem:[#allocation7 + $0x4c] sm:$0xf]
          %v372 = vld [vmem:[#allocation7 + $0x50] sm:$0xf]
          %v373 = vld [vmem:[#allocation7 + $0x54] sm:$0xf]
          %v374 = vld [vmem:[#allocation7 + $0x58] sm:$0xf]
          %v375 = vld [vmem:[#allocation7 + $0x5c] sm:$0xf]
          %v376 = vld [vmem:[#allocation7 + $0x60] sm:$0xf]
          %v377 = vld [vmem:[#allocation7 + $0x64] sm:$0xf]
          %v378 = vld [vmem:[#allocation7 + $0x68] sm:$0xf]
          %v379 = vld [vmem:[#allocation7 + $0x6c] sm:$0xf]
          %v380 = vld [vmem:[#allocation7 + $0x70] sm:$0xf]
          %v381 = vld [vmem:[#allocation7 + $0x74] sm:$0xf]
          %v382 = vld [vmem:[#allocation7 + $0x78] sm:$0xf]
          %v383 = vld [vmem:[#allocation7 + $0x7c] sm:$0xf]
          %v400 = vunpack.c.l.b16 %v336
          %v401 = vunpack.c.h.b16 %v336
          %v402 = vunpack.c.l.b16 %v337
          %v403 = vunpack.c.h.b16 %v337
          %v404 = vunpack.c.l.b16 %v338
          %v405 = vunpack.c.h.b16 %v338
          %v406 = vunpack.c.l.b16 %v339
          %v407 = vunpack.c.h.b16 %v339
          %v408 = vunpack.c.l.b16 %v340
          %v409 = vunpack.c.h.b16 %v340
          %v410 = vunpack.c.l.b16 %v341
          %v411 = vunpack.c.h.b16 %v341
          %v412 = vunpack.c.l.b16 %v342
          %v413 = vunpack.c.h.b16 %v342
          %v414 = vunpack.c.l.b16 %v343
          %v415 = vunpack.c.h.b16 %v343
          %v416 = vunpack.c.l.b16 %v344
          %v417 = vunpack.c.h.b16 %v344
          %v418 = vunpack.c.l.b16 %v345
          %v419 = vunpack.c.h.b16 %v345
          %v420 = vunpack.c.l.b16 %v346
          %v421 = vunpack.c.h.b16 %v346
          %v422 = vunpack.c.l.b16 %v347
          %v423 = vunpack.c.h.b16 %v347
          %v424 = vunpack.c.l.b16 %v348
          %v425 = vunpack.c.h.b16 %v348
          %v426 = vunpack.c.l.b16 %v349
          %v427 = vunpack.c.h.b16 %v349
          %v428 = vunpack.c.l.b16 %v350
          %v429 = vunpack.c.h.b16 %v350
          %v430 = vunpack.c.l.b16 %v351
          %v431 = vunpack.c.h.b16 %v351
          %v432 = vpack.c.b16 %v402, %v400
          %v433 = vpack.c.b16 %v403, %v401
          %v434 = vpack.c.b16 %v406, %v404
          %v435 = vpack.c.b16 %v407, %v405
          %v436 = vpack.c.b16 %v410, %v408
          %v437 = vpack.c.b16 %v411, %v409
          %v438 = vpack.c.b16 %v414, %v412
          %v439 = vpack.c.b16 %v415, %v413
          %v440 = vpack.c.b16 %v418, %v416
          %v441 = vpack.c.b16 %v419, %v417
          %v442 = vpack.c.b16 %v422, %v420
          %v443 = vpack.c.b16 %v423, %v421
          %v444 = vpack.c.b16 %v426, %v424
          %v445 = vpack.c.b16 %v427, %v425
          %v446 = vpack.c.b16 %v430, %v428
          %v447 = vpack.c.b16 %v431, %v429
          %v496 = vunpack.c.l.b16 %v352
          %v497 = vunpack.c.l.b16 %v353
          %v498 = vunpack.c.l.b16 %v354
          %v499 = vunpack.c.l.b16 %v355
          %v500 = vunpack.c.l.b16 %v356
          %v501 = vunpack.c.l.b16 %v357
          %v502 = vunpack.c.l.b16 %v358
          %v503 = vunpack.c.l.b16 %v359
          %v504 = vunpack.c.l.b16 %v360
          %v505 = vunpack.c.l.b16 %v361
          %v506 = vunpack.c.l.b16 %v362
          %v507 = vunpack.c.l.b16 %v363
          %v508 = vunpack.c.l.b16 %v364
          %v509 = vunpack.c.l.b16 %v365
          %v510 = vunpack.c.l.b16 %v366
          %v511 = vunpack.c.l.b16 %v367
          %v512 = vunpack.c.l.b16 %v368
          %v513 = vunpack.c.l.b16 %v369
          %v514 = vunpack.c.l.b16 %v370
          %v515 = vunpack.c.l.b16 %v371
          %v516 = vunpack.c.l.b16 %v372
          %v517 = vunpack.c.l.b16 %v373
          %v518 = vunpack.c.l.b16 %v374
          %v519 = vunpack.c.l.b16 %v375
          %v520 = vunpack.c.l.b16 %v376
          %v521 = vunpack.c.l.b16 %v377
          %v522 = vunpack.c.l.b16 %v378
          %v523 = vunpack.c.l.b16 %v379
          %v524 = vunpack.c.l.b16 %v380
          %v525 = vunpack.c.l.b16 %v381
          %v526 = vunpack.c.l.b16 %v382
          %v527 = vunpack.c.l.b16 %v383
          %v528 = vpack.c.b16 %v497, %v496
          %v529 = vpack.c.b16 %v499, %v498
          %v530 = vpack.c.b16 %v501, %v500
          %v531 = vpack.c.b16 %v503, %v502
          %v532 = vpack.c.b16 %v505, %v504
          %v533 = vpack.c.b16 %v507, %v506
          %v534 = vpack.c.b16 %v509, %v508
          %v535 = vpack.c.b16 %v511, %v510
          %v536 = vpack.c.b16 %v513, %v512
          %v537 = vpack.c.b16 %v515, %v514
          %v538 = vpack.c.b16 %v517, %v516
          %v539 = vpack.c.b16 %v519, %v518
          %v540 = vpack.c.b16 %v521, %v520
          %v541 = vpack.c.b16 %v523, %v522
          %v542 = vpack.c.b16 %v525, %v524
          %v543 = vpack.c.b16 %v527, %v526
          %560 = vmatprep.subr.bf16.mxu0 0
          %561 = vmatpush1.bf16.msra.mxu0 %v535
          %562 = vmatprep.subr.bf16.mxu0 0
          %563 = vmatpush1.bf16.msra.mxu0 %v534
          %564 = vmatprep.subr.bf16.mxu0 0
          %565 = vmatpush1.bf16.msra.mxu0 %v533
          %566 = vmatprep.subr.bf16.mxu0 0
          %567 = vmatpush1.bf16.msra.mxu0 %v532
          %568 = vmatprep.subr.bf16.mxu0 0
          %569 = vmatpush1.bf16.msra.mxu0 %v531
          %570 = vmatprep.subr.bf16.mxu0 0
          %571 = vmatpush1.bf16.msra.mxu0 %v530
          %572 = vmatprep.subr.bf16.mxu0 0
          %573 = vmatpush1.bf16.msra.mxu0 %v529
          %574 = vmatprep.subr.bf16.mxu0 0
          %575 = vmatpush1.bf16.msra.mxu0 %v528
          %576 = vmatprep.subr.bf16.mxu0 0
          %577 = vmatpush2.bf16.msra.mxu0 %v543
          %578 = vmatprep.subr.bf16.mxu0 0
          %579 = vmatpush2.bf16.msra.mxu0 %v542
          %580 = vmatprep.subr.bf16.mxu0 0
          %581 = vmatpush2.bf16.msra.mxu0 %v541
          %582 = vmatprep.subr.bf16.mxu0 0
          %583 = vmatpush2.bf16.msra.mxu0 %v540
          %584 = vmatprep.subr.bf16.mxu0 0
          %585 = vmatpush2.bf16.msra.mxu0 %v539
          %586 = vmatprep.subr.bf16.mxu0 0
          %587 = vmatpush2.bf16.msra.mxu0 %v538
          %588 = vmatprep.subr.bf16.mxu0 0
          %589 = vmatpush2.bf16.msra.mxu0 %v537
          %590 = vmatprep.subr.bf16.mxu0 0
          %591 = vmatpush2.bf16.msra.mxu0 %v536
          %592 = vmatprep.mubr.bf16.mxu0 %v433
          %593 = vmatmul.mubr.bf16.gmra.mxu0 %v432
          %v594 = vpop.f32.mrf.mxu0
          %v595 = vadd.f32 0.0, %v594
          %v596 = vpop.f32.mrf.mxu0
          %v597 = vpop.f32.mrf.mxu0
          %v598 = vadd.f32 0.0, %v597
          %v599 = vpop.f32.mrf.mxu0
          %600 = vmatprep.mubr.bf16.mxu0 %v435
          %601 = vmatmul.mubr.bf16.gmra.mxu0 %v434
          %v602 = vpop.f32.mrf.mxu0
          %v603 = vadd.f32 0.0, %v602
          %v604 = vpop.f32.mrf.mxu0
          %v605 = vpop.f32.mrf.mxu0
          %v606 = vadd.f32 0.0, %v605
          %v607 = vpop.f32.mrf.mxu0
          %608 = vmatprep.mubr.bf16.mxu0 %v437
          %609 = vmatmul.mubr.bf16.gmra.mxu0 %v436
          %v610 = vpop.f32.mrf.mxu0
          %v611 = vadd.f32 0.0, %v610
          %v612 = vpop.f32.mrf.mxu0
          %v613 = vpop.f32.mrf.mxu0
          %v614 = vadd.f32 0.0, %v613
          %v615 = vpop.f32.mrf.mxu0
          %616 = vmatprep.mubr.bf16.mxu0 %v439
          %617 = vmatmul.mubr.bf16.gmra.mxu0 %v438
          %v618 = vpop.f32.mrf.mxu0
          %v619 = vadd.f32 0.0, %v618
          %v620 = vpop.f32.mrf.mxu0
          %v621 = vpop.f32.mrf.mxu0
          %v622 = vadd.f32 0.0, %v621
          %v623 = vpop.f32.mrf.mxu0
          %624 = vmatprep.mubr.bf16.mxu0 %v441
          %625 = vmatmul.mubr.bf16.gmra.mxu0 %v440
          %v626 = vpop.f32.mrf.mxu0
          %v627 = vadd.f32 0.0, %v626
          %v628 = vpop.f32.mrf.mxu0
          %v629 = vpop.f32.mrf.mxu0
          %v630 = vadd.f32 0.0, %v629
          %v631 = vpop.f32.mrf.mxu0
          %632 = vmatprep.mubr.bf16.mxu0 %v443
          %633 = vmatmul.mubr.bf16.gmra.mxu0 %v442
          %v634 = vpop.f32.mrf.mxu0
          %v635 = vadd.f32 0.0, %v634
          %v636 = vpop.f32.mrf.mxu0
          %v637 = vpop.f32.mrf.mxu0
          %v638 = vadd.f32 0.0, %v637
          %v639 = vpop.f32.mrf.mxu0
          %640 = vmatprep.mubr.bf16.mxu0 %v445
          %641 = vmatmul.mubr.bf16.gmra.mxu0 %v444
          %v642 = vpop.f32.mrf.mxu0
          %v643 = vadd.f32 0.0, %v642
          %v644 = vpop.f32.mrf.mxu0
          %v645 = vpop.f32.mrf.mxu0
          %v646 = vadd.f32 0.0, %v645
          %v647 = vpop.f32.mrf.mxu0
          %648 = vmatprep.mubr.bf16.mxu0 %v447
          %649 = vmatmul.mubr.bf16.gmra.mxu0 %v446
          %v650 = vpop.f32.mrf.mxu0
          %v651 = vadd.f32 0.0, %v650
          %v652 = vpop.f32.mrf.mxu0
          %v653 = vpop.f32.mrf.mxu0
          %v654 = vadd.f32 0.0, %v653
          %v655 = vpop.f32.mrf.mxu0
          %656 = vdwg.mxu0
          %s657 = scalar_lea.vmem [#allocation2], %s326
          %658 = vst [vmem:[%s657] sm:$0xff] %v595
          %659 = vst [vmem:[%s657 + $0x8] sm:$0xff] %v598
          %660 = vst [vmem:[%s657 + $0x10] sm:$0xff] %v603
          %661 = vst [vmem:[%s657 + $0x18] sm:$0xff] %v606
          %662 = vst [vmem:[%s657 + $0x20] sm:$0xff] %v611
          %663 = vst [vmem:[%s657 + $0x28] sm:$0xff] %v614
          %664 = vst [vmem:[%s657 + $0x30] sm:$0xff] %v619
          %665 = vst [vmem:[%s657 + $0x38] sm:$0xff] %v622
          %666 = vst [vmem:[%s657 + $0x40] sm:$0xff] %v627
          %667 = vst [vmem:[%s657 + $0x48] sm:$0xff] %v630
          %668 = vst [vmem:[%s657 + $0x50] sm:$0xff] %v635
          %669 = vst [vmem:[%s657 + $0x58] sm:$0xff] %v638
          %670 = vst [vmem:[%s657 + $0x60] sm:$0xff] %v643
          %671 = vst [vmem:[%s657 + $0x68] sm:$0xff] %v646
          %672 = vst [vmem:[%s657 + $0x70] sm:$0xff] %v651
          %673 = vst [vmem:[%s657 + $0x78] sm:$0xff] %v654
          %v674 = vld [vmem:[#allocation3] sm:$0x1]
          %v675 = vadd.f32 %v595, %v598
          %v676 = vadd.f32 %v675, %v603
          %v677 = vadd.f32 %v676, %v606
          %v678 = vadd.f32 %v677, %v611
          %v679 = vadd.f32 %v678, %v614
          %v680 = vadd.f32 %v679, %v619
          %v681 = vadd.f32 %v680, %v622
          %v682 = vadd.f32 %v681, %v627
          %v683 = vadd.f32 %v682, %v630
          %v684 = vadd.f32 %v683, %v635
          %v685 = vadd.f32 %v684, %v638
          %v686 = vadd.f32 %v685, %v643
          %v687 = vadd.f32 %v686, %v646
          %v688 = vadd.f32 %v687, %v651
          %v689 = vadd.f32 %v688, %v654
          %v690 = vrot.slane %v689, 4
          %v691 = vadd.f32 %v689, %v690
          %v692 = vrot.slane %v691, 2
          %v693 = vadd.f32 %v691, %v692
          %v694 = vrot.slane %v693, 1
          %v695 = vadd.f32 %v693, %v694
          %v696 = vadd.f32 %v674, %v695
          %697 = vst [vmem:[#allocation3] sm:$0x1] %v696
          %v698 = vld [vmem:[#allocation3 + $0x1] sm:$0x1]
          %v699 = vmul.f32 %v595, %v595
          %v700 = vmul.f32 %v598, %v598
          %v701 = vmul.f32 %v603, %v603
          %v702 = vmul.f32 %v606, %v606
          %v703 = vmul.f32 %v611, %v611
          %v704 = vmul.f32 %v614, %v614
          %v705 = vmul.f32 %v619, %v619
          %v706 = vmul.f32 %v622, %v622
          %v707 = vmul.f32 %v627, %v627
          %v708 = vmul.f32 %v630, %v630
          %v709 = vmul.f32 %v635, %v635
          %v710 = vmul.f32 %v638, %v638
          %v711 = vmul.f32 %v643, %v643
          %v712 = vmul.f32 %v646, %v646
          %v713 = vmul.f32 %v651, %v651
          %v714 = vmul.f32 %v654, %v654
          %v715 = vadd.f32 %v699, %v700
          %v716 = vadd.f32 %v715, %v701
          %v717 = vadd.f32 %v716, %v702
          %v718 = vadd.f32 %v717, %v703
          %v719 = vadd.f32 %v718, %v704
          %v720 = vadd.f32 %v719, %v705
          %v721 = vadd.f32 %v720, %v706
          %v722 = vadd.f32 %v721, %v707
          %v723 = vadd.f32 %v722, %v708
          %v724 = vadd.f32 %v723, %v709
          %v725 = vadd.f32 %v724, %v710
          %v726 = vadd.f32 %v725, %v711
          %v727 = vadd.f32 %v726, %v712
          %v728 = vadd.f32 %v727, %v713
          %v729 = vadd.f32 %v728, %v714
          %v730 = vrot.slane %v729, 4
          %v731 = vadd.f32 %v729, %v730
          %v732 = vrot.slane %v731, 2
          %v733 = vadd.f32 %v731, %v732
          %v734 = vrot.slane %v733, 1
          %v735 = vadd.f32 %v733, %v734
          %v736 = vadd.f32 %v698, %v735
          %737 = vst [vmem:[#allocation3 + $0x1] sm:$0x1] %v736
        $region60: #{tpu_custom_call.1} parent=43 // pred_fallthru
          _
        %p738 = scmp.eq.s32.totalorder %s28, 1
        // Predicated region
        $region65: #{tpu_custom_call.1} parent=43 // pred_check
          %p739 = pneg %p738
        $region66: #{tpu_custom_call.1} parent=43 // pred_check_branch
          %741 = sbr.rel (%p739) target = $region68
        $region67: #{tpu_custom_call.1} parent=43 // pred_region
          %v742 = vld [vmem:[#allocation3] sm:$0x1]
          %v743 = vmul.f32 %v742, 0.00390625
          %v744 = vld [vmem:[#allocation3 + $0x1] sm:$0x1]
          %v745 = vmul.f32 %v744, 0.00390625
          %v746 = vmul.f32 %v743, %v743
          %v747 = vsub.f32 %v745, %v746
          %v748 = vmax.f32 %v747, 0.0
          %v749 = vld [vmem:[%s2] sm:$0x1]
          %v750 = vadd.f32 %v748, 1e-05
          %v751 = vrsqrt.pop %v750
          %v752 = vmul.f32 %v749, %v751
          %v753 = vld [vmem:[%s3] sm:$0x1]
          %v754 = vmul.f32 %v743, %v752
          %v755 = vsub.f32 %v753, %v754
          %s756 = scalar_lea.vmem [#allocation2], %s326
          %v757 = vld [vmem:[%s756] sm:$0xff]
          %v758 = vld [vmem:[%s756 + $0x8] sm:$0xff]
          %v759 = vld [vmem:[%s756 + $0x10] sm:$0xff]
          %v760 = vld [vmem:[%s756 + $0x18] sm:$0xff]
          %v761 = vld [vmem:[%s756 + $0x20] sm:$0xff]
          %v762 = vld [vmem:[%s756 + $0x28] sm:$0xff]
          %v763 = vld [vmem:[%s756 + $0x30] sm:$0xff]
          %v764 = vld [vmem:[%s756 + $0x38] sm:$0xff]
          %v765 = vld [vmem:[%s756 + $0x40] sm:$0xff]
          %v766 = vld [vmem:[%s756 + $0x48] sm:$0xff]
          %v767 = vld [vmem:[%s756 + $0x50] sm:$0xff]
          %v768 = vld [vmem:[%s756 + $0x58] sm:$0xff]
          %v769 = vld [vmem:[%s756 + $0x60] sm:$0xff]
          %v770 = vld [vmem:[%s756 + $0x68] sm:$0xff]
          %v771 = vld [vmem:[%s756 + $0x70] sm:$0xff]
          %v772 = vld [vmem:[%s756 + $0x78] sm:$0xff]
          %v774 = vlaneseq
          %v775 = vshrl.u32 %v774, 7
          %v776 = vsub.s32 0, %v775
          %v777 = vrot.slane %v752, %v776
          %v779 = vmul.f32 %v757, %v777
          %v780 = vmul.f32 %v758, %v777
          %v781 = vmul.f32 %v759, %v777
          %v782 = vmul.f32 %v760, %v777
          %v783 = vmul.f32 %v761, %v777
          %v784 = vmul.f32 %v762, %v777
          %v785 = vmul.f32 %v763, %v777
          %v786 = vmul.f32 %v764, %v777
          %v787 = vmul.f32 %v765, %v777
          %v788 = vmul.f32 %v766, %v777
          %v789 = vmul.f32 %v767, %v777
          %v790 = vmul.f32 %v768, %v777
          %v791 = vmul.f32 %v769, %v777
          %v792 = vmul.f32 %v770, %v777
          %v793 = vmul.f32 %v771, %v777
          %v794 = vmul.f32 %v772, %v777
          %v796 = vlaneseq
          %v797 = vshrl.u32 %v796, 7
          %v798 = vsub.s32 0, %v797
          %v799 = vrot.slane %v755, %v798
          %v801 = vadd.f32 %v779, %v799
          %v802 = vadd.f32 %v780, %v799
          %v803 = vadd.f32 %v781, %v799
          %v804 = vadd.f32 %v782, %v799
          %v805 = vadd.f32 %v783, %v799
          %v806 = vadd.f32 %v784, %v799
          %v807 = vadd.f32 %v785, %v799
          %v808 = vadd.f32 %v786, %v799
          %v809 = vadd.f32 %v787, %v799
          %v810 = vadd.f32 %v788, %v799
          %v811 = vadd.f32 %v789, %v799
          %v812 = vadd.f32 %v790, %v799
          %v813 = vadd.f32 %v791, %v799
          %v814 = vadd.f32 %v792, %v799
          %v815 = vadd.f32 %v793, %v799
          %v816 = vadd.f32 %v794, %v799
          %v817 = vmax.f32 %v801, 0.0
          %v818 = vmax.f32 %v802, 0.0
          %v819 = vmax.f32 %v803, 0.0
          %v820 = vmax.f32 %v804, 0.0
          %v821 = vmax.f32 %v805, 0.0
          %v822 = vmax.f32 %v806, 0.0
          %v823 = vmax.f32 %v807, 0.0
          %v824 = vmax.f32 %v808, 0.0
          %v825 = vmax.f32 %v809, 0.0
          %v826 = vmax.f32 %v810, 0.0
          %v827 = vmax.f32 %v811, 0.0
          %v828 = vmax.f32 %v812, 0.0
          %v829 = vmax.f32 %v813, 0.0
          %v830 = vmax.f32 %v814, 0.0
          %v831 = vmax.f32 %v815, 0.0
          %v832 = vmax.f32 %v816, 0.0
          %v833 = vpack.c.bf16 %v818, %v817
          %v834 = vpack.c.bf16 %v820, %v819
          %v835 = vpack.c.bf16 %v822, %v821
          %v836 = vpack.c.bf16 %v824, %v823
          %v837 = vpack.c.bf16 %v826, %v825
          %v838 = vpack.c.bf16 %v828, %v827
          %v839 = vpack.c.bf16 %v830, %v829
          %v840 = vpack.c.bf16 %v832, %v831
          %v841 = vld [vmem:[#allocation9] sm:$0xff]
          %v842 = vld [vmem:[#allocation9 + $0x8] sm:$0xff]
          %v843 = vld [vmem:[#allocation9 + $0x10] sm:$0xff]
          %v844 = vld [vmem:[#allocation9 + $0x18] sm:$0xff]
          %v845 = vld [vmem:[#allocation9 + $0x20] sm:$0xff]
          %v846 = vld [vmem:[#allocation9 + $0x28] sm:$0xff]
          %v847 = vld [vmem:[#allocation9 + $0x30] sm:$0xff]
          %v848 = vld [vmem:[#allocation9 + $0x38] sm:$0xff]
          %v849 = vld [vmem:[#allocation9 + $0x40] sm:$0xff]
          %v850 = vld [vmem:[#allocation9 + $0x48] sm:$0xff]
          %v851 = vld [vmem:[#allocation9 + $0x50] sm:$0xff]
          %v852 = vld [vmem:[#allocation9 + $0x58] sm:$0xff]
          %v853 = vld [vmem:[#allocation9 + $0x60] sm:$0xff]
          %v854 = vld [vmem:[#allocation9 + $0x68] sm:$0xff]
          %v855 = vld [vmem:[#allocation9 + $0x70] sm:$0xff]
          %v856 = vld [vmem:[#allocation9 + $0x78] sm:$0xff]
          %v857 = vld [vmem:[%s5] sm:$0x3]
          %v859 = vlaneseq
          %v860 = vshrl.u32 %v859, 7
          %v861 = vsub.s32 0, %v860
          %v862 = vrot.slane %v857, %v861
          %v863 = vlaneseq
          %v864 = vshrl.u32 %v863, 7
          %v865 = vsub.s32 1, %v864
          %v866 = vrot.slane %v857, %v865
          %v885 = vunpack.c.l.b16 %v841
          %v886 = vunpack.c.h.b16 %v841
          %v887 = vunpack.c.l.b16 %v842
          %v888 = vunpack.c.h.b16 %v842
          %v889 = vunpack.c.l.b16 %v843
          %v890 = vunpack.c.h.b16 %v843
          %v891 = vunpack.c.l.b16 %v844
          %v892 = vunpack.c.h.b16 %v844
          %v893 = vunpack.c.l.b16 %v845
          %v894 = vunpack.c.h.b16 %v845
          %v895 = vunpack.c.l.b16 %v846
          %v896 = vunpack.c.h.b16 %v846
          %v897 = vunpack.c.l.b16 %v847
          %v898 = vunpack.c.h.b16 %v847
          %v899 = vunpack.c.l.b16 %v848
          %v900 = vunpack.c.h.b16 %v848
          %v901 = vunpack.c.l.b16 %v849
          %v902 = vunpack.c.h.b16 %v849
          %v903 = vunpack.c.l.b16 %v850
          %v904 = vunpack.c.h.b16 %v850
          %v905 = vunpack.c.l.b16 %v851
          %v906 = vunpack.c.h.b16 %v851
          %v907 = vunpack.c.l.b16 %v852
          %v908 = vunpack.c.h.b16 %v852
          %v909 = vunpack.c.l.b16 %v853
          %v910 = vunpack.c.h.b16 %v853
          %v911 = vunpack.c.l.b16 %v854
          %v912 = vunpack.c.h.b16 %v854
          %v913 = vunpack.c.l.b16 %v855
          %v914 = vunpack.c.h.b16 %v855
          %v915 = vunpack.c.l.b16 %v856
          %v916 = vunpack.c.h.b16 %v856
          %v917 = vpack.c.b16 %v887, %v885
          %v918 = vpack.c.b16 %v888, %v886
          %v919 = vpack.c.b16 %v891, %v889
          %v920 = vpack.c.b16 %v892, %v890
          %v921 = vpack.c.b16 %v895, %v893
          %v922 = vpack.c.b16 %v896, %v894
          %v923 = vpack.c.b16 %v899, %v897
          %v924 = vpack.c.b16 %v900, %v898
          %v925 = vpack.c.b16 %v903, %v901
          %v926 = vpack.c.b16 %v904, %v902
          %v927 = vpack.c.b16 %v907, %v905
          %v928 = vpack.c.b16 %v908, %v906
          %v929 = vpack.c.b16 %v911, %v909
          %v930 = vpack.c.b16 %v912, %v910
          %v931 = vpack.c.b16 %v915, %v913
          %v932 = vpack.c.b16 %v916, %v914
          %949 = vmatprep.subr.bf16.mxu0 %v932
          %950 = vmatpush1.bf16.msra.mxu0 %v931
          %951 = vmatprep.subr.bf16.mxu0 %v930
          %952 = vmatpush1.bf16.msra.mxu0 %v929
          %953 = vmatprep.subr.bf16.mxu0 %v928
          %954 = vmatpush1.bf16.msra.mxu0 %v927
          %955 = vmatprep.subr.bf16.mxu0 %v926
          %956 = vmatpush1.bf16.msra.mxu0 %v925
          %957 = vmatprep.subr.bf16.mxu0 %v924
          %958 = vmatpush1.bf16.msra.mxu0 %v923
          %959 = vmatprep.subr.bf16.mxu0 %v922
          %960 = vmatpush1.bf16.msra.mxu0 %v921
          %961 = vmatprep.subr.bf16.mxu0 %v920
          %962 = vmatpush1.bf16.msra.mxu0 %v919
          %963 = vmatprep.subr.bf16.mxu0 %v918
          %964 = vmatpush1.bf16.msra.mxu0 %v917
          %965 = vmatprep.subr.bf16.mxu0 0
          %966 = vmatpush2.bf16.msra.mxu0 0
          %967 = vmatprep.subr.bf16.mxu0 0
          %968 = vmatpush2.bf16.msra.mxu0 0
          %969 = vmatprep.subr.bf16.mxu0 0
          %970 = vmatpush2.bf16.msra.mxu0 0
          %971 = vmatprep.subr.bf16.mxu0 0
          %972 = vmatpush2.bf16.msra.mxu0 0
          %973 = vmatprep.subr.bf16.mxu0 0
          %974 = vmatpush2.bf16.msra.mxu0 0
          %975 = vmatprep.subr.bf16.mxu0 0
          %976 = vmatpush2.bf16.msra.mxu0 0
          %977 = vmatprep.subr.bf16.mxu0 0
          %978 = vmatpush2.bf16.msra.mxu0 0
          %979 = vmatprep.subr.bf16.mxu0 0
          %980 = vmatpush2.bf16.msra.mxu0 0
          %981 = vmatprep.mubr.bf16.mxu0 0
          %982 = vmatmul.mubr.bf16.gmra.mxu0 %v833
          %v983 = vpop.f32.mrf.mxu0
          %v984 = vadd.f32 %v862, %v983
          %v985 = vpop.f32.mrf.mxu0
          %v986 = vadd.f32 %v866, %v985
          %v987 = vpop.f32.mrf.mxu0
          %v988 = vadd.f32 %v862, %v987
          %v989 = vpop.f32.mrf.mxu0
          %v990 = vadd.f32 %v866, %v989
          %991 = vmatprep.mubr.bf16.mxu0 0
          %992 = vmatmul.mubr.bf16.gmra.mxu0 %v834
          %v993 = vpop.f32.mrf.mxu0
          %v994 = vadd.f32 %v862, %v993
          %v995 = vpop.f32.mrf.mxu0
          %v996 = vadd.f32 %v866, %v995
          %v997 = vpop.f32.mrf.mxu0
          %v998 = vadd.f32 %v862, %v997
          %v999 = vpop.f32.mrf.mxu0
          %v1000 = vadd.f32 %v866, %v999
          %1001 = vmatprep.mubr.bf16.mxu0 0
          %1002 = vmatmul.mubr.bf16.gmra.mxu0 %v835
          %v1003 = vpop.f32.mrf.mxu0
          %v1004 = vadd.f32 %v862, %v1003
          %v1005 = vpop.f32.mrf.mxu0
          %v1006 = vadd.f32 %v866, %v1005
          %v1007 = vpop.f32.mrf.mxu0
          %v1008 = vadd.f32 %v862, %v1007
          %v1009 = vpop.f32.mrf.mxu0
          %v1010 = vadd.f32 %v866, %v1009
          %1011 = vmatprep.mubr.bf16.mxu0 0
          %1012 = vmatmul.mubr.bf16.gmra.mxu0 %v836
          %v1013 = vpop.f32.mrf.mxu0
          %v1014 = vadd.f32 %v862, %v1013
          %v1015 = vpop.f32.mrf.mxu0
          %v1016 = vadd.f32 %v866, %v1015
          %v1017 = vpop.f32.mrf.mxu0
          %v1018 = vadd.f32 %v862, %v1017
          %v1019 = vpop.f32.mrf.mxu0
          %v1020 = vadd.f32 %v866, %v1019
          %1021 = vmatprep.mubr.bf16.mxu0 0
          %1022 = vmatmul.mubr.bf16.gmra.mxu0 %v837
          %v1023 = vpop.f32.mrf.mxu0
          %v1024 = vadd.f32 %v862, %v1023
          %v1025 = vpop.f32.mrf.mxu0
          %v1026 = vadd.f32 %v866, %v1025
          %v1027 = vpop.f32.mrf.mxu0
          %v1028 = vadd.f32 %v862, %v1027
          %v1029 = vpop.f32.mrf.mxu0
          %v1030 = vadd.f32 %v866, %v1029
          %1031 = vmatprep.mubr.bf16.mxu0 0
          %1032 = vmatmul.mubr.bf16.gmra.mxu0 %v838
          %v1033 = vpop.f32.mrf.mxu0
          %v1034 = vadd.f32 %v862, %v1033
          %v1035 = vpop.f32.mrf.mxu0
          %v1036 = vadd.f32 %v866, %v1035
          %v1037 = vpop.f32.mrf.mxu0
          %v1038 = vadd.f32 %v862, %v1037
          %v1039 = vpop.f32.mrf.mxu0
          %v1040 = vadd.f32 %v866, %v1039
          %1041 = vmatprep.mubr.bf16.mxu0 0
          %1042 = vmatmul.mubr.bf16.gmra.mxu0 %v839
          %v1043 = vpop.f32.mrf.mxu0
          %v1044 = vadd.f32 %v862, %v1043
          %v1045 = vpop.f32.mrf.mxu0
          %v1046 = vadd.f32 %v866, %v1045
          %v1047 = vpop.f32.mrf.mxu0
          %v1048 = vadd.f32 %v862, %v1047
          %v1049 = vpop.f32.mrf.mxu0
          %v1050 = vadd.f32 %v866, %v1049
          %1051 = vmatprep.mubr.bf16.mxu0 0
          %1052 = vmatmul.mubr.bf16.gmra.mxu0 %v840
          %v1053 = vpop.f32.mrf.mxu0
          %v1054 = vadd.f32 %v862, %v1053
          %v1055 = vpop.f32.mrf.mxu0
          %v1056 = vadd.f32 %v866, %v1055
          %v1057 = vpop.f32.mrf.mxu0
          %v1058 = vadd.f32 %v862, %v1057
          %v1059 = vpop.f32.mrf.mxu0
          %v1060 = vadd.f32 %v866, %v1059
          %1061 = vdwg.mxu0
          %1062 = vst [vmem:[%s319] sm:$0xff] %v984
          %1063 = vst [vmem:[%s319 + $0x8] sm:$0xff] %v986
          %1064 = vst [vmem:[%s319 + $0x10] sm:$0xff] %v988
          %1065 = vst [vmem:[%s319 + $0x18] sm:$0xff] %v990
          %1066 = vst [vmem:[%s319 + $0x20] sm:$0xff] %v994
          %1067 = vst [vmem:[%s319 + $0x28] sm:$0xff] %v996
          %1068 = vst [vmem:[%s319 + $0x30] sm:$0xff] %v998
          %1069 = vst [vmem:[%s319 + $0x38] sm:$0xff] %v1000
          %1070 = vst [vmem:[%s319 + $0x40] sm:$0xff] %v1004
          %1071 = vst [vmem:[%s319 + $0x48] sm:$0xff] %v1006
          %1072 = vst [vmem:[%s319 + $0x50] sm:$0xff] %v1008
          %1073 = vst [vmem:[%s319 + $0x58] sm:$0xff] %v1010
          %1074 = vst [vmem:[%s319 + $0x60] sm:$0xff] %v1014
          %1075 = vst [vmem:[%s319 + $0x68] sm:$0xff] %v1016
          %1076 = vst [vmem:[%s319 + $0x70] sm:$0xff] %v1018
          %1077 = vst [vmem:[%s319 + $0x78] sm:$0xff] %v1020
          %1078 = vst [vmem:[%s319 + $0x80] sm:$0xff] %v1024
          %1079 = vst [vmem:[%s319 + $0x88] sm:$0xff] %v1026
          %1080 = vst [vmem:[%s319 + $0x90] sm:$0xff] %v1028
          %1081 = vst [vmem:[%s319 + $0x98] sm:$0xff] %v1030
          %1082 = vst [vmem:[%s319 + $0xa0] sm:$0xff] %v1034
          %1083 = vst [vmem:[%s319 + $0xa8] sm:$0xff] %v1036
          %1084 = vst [vmem:[%s319 + $0xb0] sm:$0xff] %v1038
          %1085 = vst [vmem:[%s319 + $0xb8] sm:$0xff] %v1040
          %1086 = vst [vmem:[%s319 + $0xc0] sm:$0xff] %v1044
          %1087 = vst [vmem:[%s319 + $0xc8] sm:$0xff] %v1046
          %1088 = vst [vmem:[%s319 + $0xd0] sm:$0xff] %v1048
          %1089 = vst [vmem:[%s319 + $0xd8] sm:$0xff] %v1050
          %1090 = vst [vmem:[%s319 + $0xe0] sm:$0xff] %v1054
          %1091 = vst [vmem:[%s319 + $0xe8] sm:$0xff] %v1056
          %1092 = vst [vmem:[%s319 + $0xf0] sm:$0xff] %v1058
          %1093 = vst [vmem:[%s319 + $0xf8] sm:$0xff] %v1060
        $region68: #{tpu_custom_call.1} parent=43 // pred_fallthru
          _
        %s1094 = sand.u32 %s181, 1
        %s1095 = scalar_lea.sflag [#allocation6], %s1094
        %s1096 = sand.u32 %s181, 1
        %s1097 = smul.addr %s1096, 256
        %s1098 = scalar_lea.vmem [#allocation10], %s1097
        // Predicated region
        $region69: #{tpu_custom_call.1} parent=43 // pred_check
          %p1099 = pneg %p191
        $region70: #{tpu_custom_call.1} parent=43 // pred_check_branch
          %1101 = sbr.rel (%p1099) target = $region72
        $region71: #{tpu_custom_call.1} parent=43 // pred_region
          %s1102 = smul.u32 %s29, %s28
          %s1103 = smul.u32 16, %s1102
          %s1105 = ssub.s32 4096, 4096
          %1106 = vsyncadd %s1095, %s1105
          %s1107 = smul.addr %s1103, 2
          %s1108 = smul.addr %s1107, 128
          %s1109 = scalar_lea.hbm %s6, %s1108
          %s1110 = sshll.u32 %s1098, 4
          %s1111 = int_to_ptr.vmem [resolvable:$true] %s1110
          %1116 = dma.vmem_to_hbm [thread:$0]  %s1111, 4096, %s1109, %s1095, 256, 256, 16
        $region72: #{tpu_custom_call.1} parent=43 // pred_fallthru
          _
      $region44: #{tpu_custom_call.1} parent=5 // pred_fallthru
        _
      %p1117 = scmp.le.s32.totalorder 2, %s19
      // Predicated region
      $region73: #{tpu_custom_call.1} parent=5 // pred_check
        %p1118 = pneg %p1117
      $region74: #{tpu_custom_call.1} parent=5 // pred_check_branch
        %1120 = sbr.rel (%p1118) target = $region76
      $region75: #{tpu_custom_call.1} parent=5 // pred_region
        %s1121 = ssub.s32 %s19, 2
        // Predicated region
        $region77: #{tpu_custom_call.1} parent=75 // pred_check
          %p1122 = pneg %p197
        $region78: #{tpu_custom_call.1} parent=75 // pred_check_branch
          %1124 = sbr.rel (%p1122) target = $region80
        $region79: #{tpu_custom_call.1} parent=75 // pred_region
          %s1125 = sand.u32 %s182, 1
          %s1126 = scalar_lea.sflag [#allocation6], %s1125
          %s1127 = sand.u32 %s182, 1
          %s1128 = smul.addr %s1127, 256
          %s1129 = scalar_lea.vmem [#allocation10], %s1128
          %1130 = dma.done %s1126, 4096
        $region80: #{tpu_custom_call.1} parent=75 // pred_fallthru
          _
      $region76: #{tpu_custom_call.1} parent=5 // pred_fallthru
        _
    $region6: #{tpu_custom_call.1} parent=1 // loop_footer
      %s23 = sadd.s32 1, %s19
    $region7: #{tpu_custom_call.1} parent=1 // loop_footer_branch
      %18 = sbr.rel target = $region3
    $region8: #{tpu_custom_call.1} parent=1 // loop_exit
      _
    %1131 = vsyncpa [#allocation5], 1
    %s1132 = scalar_lea.sflag [#allocation5], 1
    %1133 = vsyncpa %s1132, 1
    %1134 = vsyncpa [#allocation8], 1
    %1135 = vsyncpa [#allocation6], 1
    %s1136 = scalar_lea.sflag [#allocation6], 1
    %1137 = vsyncpa %s1136, 1

</llo_original>
